<compile_context>
chip_gen: v7x
topology: tpu7x:2x2x1
jax: 0.10.0
libtpu: 0.0.40
codegen_flags: <defaults>
</compile_context>

<pallas_src>
import functools

import jax
import jax.numpy as jnp
from jax.experimental import pallas as pl
from jax.experimental.pallas import tpu as pltpu

# Sobel weights, identical to the PyTorch module's __init__ (used by the reference).
GX = ((2.0, 0.0, -2.0),
      (4.0, 0.0, -4.0),
      (2.0, 0.0, -2.0))
GY = ((2.0, 4.0, 2.0),
      (0.0, 0.0, 0.0),
      (-2.0, -4.0, -2.0))

_BLOCK_F32_BYTES = 2 * 1024 * 1024      # target f32-equivalent bytes per block
_SMALL_PROBLEM_F32 = 1 * 1024 * 1024    # below this: one block, one grid step
_TARGET_GRID_STEPS = 8                  # pipeline-depth / 2-TC sharding target
_VMEM_LIMIT = 48 * 1024 * 1024          # <= v7x's 64 MiB physical VMEM


def _roll(x, shift, axis):
    """pltpu.roll with the shift normalized into [0, size); identity if 0."""
    size = x.shape[axis]
    shift = shift % size
    if shift == 0:
        return x
    return pltpu.roll(x, shift, axis=axis)   # XLU rotate, co-issues with VPU work


def _finalize(d, s_l, s_r, d_l, d_r, out_dtype):
    # gx = 2*(s_l - s_r), gy = 2*(d_l + 2 d + d_r); fold the 2x into one
    # multiply after the sqrt.
    a = s_l - s_r
    b = d_l + 2.0 * d + d_r
    return (2.0 * jnp.sqrt(a * a + b * b)).astype(out_dtype)


def _sobel_flat_kernel(x_ref, m_ref, o_ref, *, W):
    # x_ref, o_ref: (TN, Lp) -- each row is one zero-tail-padded flattened image.
    # m_ref: (4, Lp) 0/1 f32 masks [up, down, left, right], grid-invariant.
    t = x_ref[...].astype(jnp.float32)
    m = m_ref[...]
    m_up, m_dn, m_l, m_r = m[0:1], m[1:2], m[2:3], m[3:4]   # (1, Lp), bcast over TN

    # Vertical [1,2,1]/[1,0,-1] pass: flat-index shifts by +-W.  The per-row
    # roll wraps only inside one image and every wrapped-in lane is masked.
    up = _roll(t, W, axis=1) * m_up       # x[h-1, w]
    dn = _roll(t, -W, axis=1) * m_dn      # x[h+1, w]
    s = up + 2.0 * t + dn
    d = up - dn

    # Horizontal pass: +-1 lane shifts, image borders masked (zero padding).
    s_l = _roll(s, 1, axis=1) * m_l
    s_r = _roll(s, -1, axis=1) * m_r
    d_l = _roll(d, 1, axis=1) * m_l
    d_r = _roll(d, -1, axis=1) * m_r

    o_ref[...] = _finalize(d, s_l, s_r, d_l, d_r, o_ref.dtype)


def _sobel_hw_kernel(x_ref, m_ref, o_ref):
    # x_ref, o_ref: (TN, H, W) with W % 128 == 0 (lane-dense rows).
    # m_ref: (4, H, W) 0/1 f32 masks [top, bottom, left, right], grid-invariant.
    t = x_ref[...].astype(jnp.float32)
    m = m_ref[...]
    m_top, m_bot, m_l, m_r = m[0:1], m[1:2], m[2:3], m[3:4]   # (1,H,W), bcast over TN

    # Vertical pass: +-1 sublane rotates (much cheaper than +-W lane rolls).
    up = _roll(t, 1, axis=1) * m_top      # x[h-1, w]
    dn = _roll(t, -1, axis=1) * m_bot     # x[h+1, w]
    s = up + 2.0 * t + dn
    d = up - dn

    # Horizontal pass: +-1 lane rotates.
    s_l = _roll(s, 1, axis=2) * m_l
    s_r = _roll(s, -1, axis=2) * m_r
    d_l = _roll(d, 1, axis=2) * m_l
    d_r = _roll(d, -1, axis=2) * m_r

    o_ref[...] = _finalize(d, s_l, s_r, d_l, d_r, o_ref.dtype)


def _pick_images_per_block(n, image_f32_bytes):
    """Images per block, bounded by the f32 temporary footprint (~10x the block
    lives in VMEM at once).  Tiny problems get a single grid step; otherwise
    aim for >= _TARGET_GRID_STEPS steps so the pipeline has depth."""
    max_tn = max(1, _BLOCK_F32_BYTES // image_f32_bytes)
    if n * image_f32_bytes <= _SMALL_PROBLEM_F32:
        desired = n                       # tiny: one block, one grid step
    else:
        desired = max(1, n // _TARGET_GRID_STEPS)
    tn = max(1, min(n, max_tn, desired))
    while n % tn != 0:                    # keep every block full-sized
        tn -= 1
    return tn


def _run_sobel(kernel, x, masks, out_dtype, cost):
    """Shared pallas_call: x is (NB, TN, ...spatial), masks is (4, ...spatial)."""
    NB = x.shape[0]
    data_block = (pl.Squeezed(),) + tuple(x.shape[1:])
    data_tail = (0,) * (x.ndim - 1)
    mask_idx = (0,) * masks.ndim

    def data_map(b):
        return (b,) + data_tail

    def mask_map(b):
        return mask_idx          # constant: masks fetched once, stay resident

    return pl.pallas_call(
        kernel,
        out_shape=jax.ShapeDtypeStruct(x.shape, out_dtype),
        grid_spec=pltpu.PrefetchScalarGridSpec(
            num_scalar_prefetch=0,
            grid=(NB,),
            in_specs=[
                pl.BlockSpec(data_block, data_map),
                pl.BlockSpec(tuple(masks.shape), mask_map),
            ],
            out_specs=pl.BlockSpec(data_block, data_map),
        ),
        compiler_params=pltpu.CompilerParams(
            dimension_semantics=("parallel",),
            vmem_limit_bytes=_VMEM_LIMIT,
        ),
        cost_estimate=cost,
    )(x, masks)


def sobel(img):
    """img: (N, 1, H, W) -> (N, 1, H, W) = sqrt(conv(img,Gx)^2 + conv(img,Gy)^2)."""
    N, C, H, W = img.shape
    assert C == 1, "Sobel expects a single input channel"
    out_dtype = img.dtype if jnp.issubdtype(img.dtype, jnp.floating) else jnp.float32
    io_bytes = img.dtype.itemsize + jnp.dtype(out_dtype).itemsize

    # TODO(synk): intra-image row tiling with halo rows for single images whose
    # f32 temporaries exceed the VMEM budget (multi-megapixel); not needed here.

    if W % 128 == 0:
        # (TN, H, W) lane-dense layout.
        TN = _pick_images_per_block(N, H * W * 4)
        NB = N // TN
        x = img.reshape(NB, TN, H, W)

        hh = jnp.arange(H, dtype=jnp.int32)[:, None]
        ww = jnp.arange(W, dtype=jnp.int32)[None, :]
        masks = jnp.stack([
            jnp.broadcast_to(hh > 0, (H, W)),        # up-neighbor valid
            jnp.broadcast_to(hh < H - 1, (H, W)),    # down-neighbor valid
            jnp.broadcast_to(ww > 0, (H, W)),        # left-neighbor valid
            jnp.broadcast_to(ww < W - 1, (H, W)),    # right-neighbor valid
        ]).astype(jnp.float32)

        cost = pl.CostEstimate(
            flops=20 * N * H * W,
            transcendentals=N * H * W,               # one sqrt per pixel
            bytes_accessed=N * H * W * io_bytes + masks.size * 4)
        out = _run_sobel(_sobel_hw_kernel, x, masks, out_dtype, cost)
        return out.reshape(N, 1, H, W)

    # Flattened lane-dense layout: each image is one row of length
    # Lp = round_up(H*W, 128); zero tail so stores are full-lane vst's.
    L = H * W
    Lp = ((L + 127) // 128) * 128
    x = img.reshape(N, L)
    if Lp != L:
        x = jnp.pad(x, ((0, 0), (0, Lp - L)))
    TN = _pick_images_per_block(N, Lp * 4)
    NB = N // TN
    x = x.reshape(NB, TN, Lp)

    p = jnp.arange(Lp, dtype=jnp.int32)
    col = p % W
    masks = jnp.stack([
        p >= W,              # up-neighbor valid
        p < L - W,           # down-neighbor valid
        col != 0,            # left-neighbor valid
        col != W - 1,        # right-neighbor valid
    ]).astype(jnp.float32)

    cost = pl.CostEstimate(
        flops=20 * N * Lp,
        transcendentals=N * Lp,
        bytes_accessed=N * Lp * io_bytes + masks.size * 4)
    out = _run_sobel(functools.partial(_sobel_flat_kernel, W=W),
                     x, masks, out_dtype, cost)
    out = out.reshape(N, Lp)
    if Lp != L:
        out = out[:, :L]
    return out.reshape(N, 1, H, W)


def _sobel_ref(img):
    """Pure-JAX reference (explicit 3x3 cross-correlation), for verification."""
    img_f = img.astype(jnp.float32)
    N, _, H, W = img_f.shape
    xp = jnp.pad(img_f[:, 0], ((0, 0), (1, 1), (1, 1)))
    gx = jnp.zeros((N, H, W), jnp.float32)
    gy = jnp.zeros((N, H, W), jnp.float32)
    for ky in range(3):
        for kx in range(3):
            win = xp[:, ky:ky + H, kx:kx + W]
            gx = gx + GX[ky][kx] * win
            gy = gy + GY[ky][kx] * win
    return jnp.sqrt(gx * gx + gy * gy)[:, None]


if __name__ == "__main__":
    key = jax.random.PRNGKey(0)

    shapes = [
        (2, 1, 16, 16),     # flat path, single grid step (tiny problem)
        (4, 1, 8, 16),      # flat path, several images per block
        (3, 1, 20, 24),     # flat path with L=480 -> Lp=512 tail padding
        (2, 1, 16, 128),    # (TN, H, W) path, single step
        (16, 1, 160, 128),  # (TN, H, W) path, multi-step grid (pipelined)
    ]
    for i, shp in enumerate(shapes):
        img = jax.random.normal(jax.random.fold_in(key, i), shp, dtype=jnp.float32)
        out = sobel(img)
        jax.block_until_ready(out)
        ref = _sobel_ref(img)
        assert out.shape == shp, f"shape mismatch for {shp}: {out.shape}"
        assert jnp.allclose(out, ref, atol=1e-4, rtol=1e-4), f"mismatch vs reference for {shp}"

    print("KERNEL_OK")
</pallas_src>

<mosaic_0001>
module attributes {stable_mosaic.version = 11 : i64} {
  func.func @_sobel_flat_kernel(%arg0: i32, %arg1: memref<1x2x256xf32, #tpu.memory_space<vmem>>, %arg2: memref<4x256xf32, #tpu.memory_space<vmem>>, %arg3: memref<1x2x256xf32, #tpu.memory_space<vmem>>) attributes {dimension_semantics = [#tpu.dimension_semantics<parallel>], iteration_bounds = array<i64: 1>, scalar_prefetch = 0 : i64, scratch_operands = 0 : i64, tpu.core_type = #tpu.core_type<tc>, window_params = [{transform_indices = @transform_0, window_bounds = array<i64: 1, 2, 256>}, {pipeline_mode = #tpu.pipeline_mode<synchronous>, transform_indices = @transform_1, window_bounds = array<i64: 4, 256>}, {transform_indices = @transform_2, window_bounds = array<i64: 1, 2, 256>}]} {
    %c0 = arith.constant 0 : index
    %c0_0 = arith.constant 0 : index
    %c0_1 = arith.constant 0 : index
    %0 = vector.load %arg1[%c0, %c0_0, %c0_1] : memref<1x2x256xf32, #tpu.memory_space<vmem>>, vector<1x2x256xf32>
    %1 = vector.shape_cast %0 : vector<1x2x256xf32> to vector<2x256xf32>
    %c0_2 = arith.constant 0 : index
    %c0_3 = arith.constant 0 : index
    %2 = vector.load %arg2[%c0_2, %c0_3] : memref<4x256xf32, #tpu.memory_space<vmem>>, vector<4x256xf32>
    %3 = vector.extract_strided_slice %2 {offsets = [0, 0], sizes = [1, 256], strides = [1, 1]} : vector<4x256xf32> to vector<1x256xf32>
    %4 = vector.extract_strided_slice %2 {offsets = [1, 0], sizes = [1, 256], strides = [1, 1]} : vector<4x256xf32> to vector<1x256xf32>
    %5 = vector.extract_strided_slice %2 {offsets = [2, 0], sizes = [1, 256], strides = [1, 1]} : vector<4x256xf32> to vector<1x256xf32>
    %6 = vector.extract_strided_slice %2 {offsets = [3, 0], sizes = [1, 256], strides = [1, 1]} : vector<4x256xf32> to vector<1x256xf32>
    %c16_i32 = arith.constant 16 : i32
    %7 = tpu.dynamic_rotate %1 by %c16_i32 dim 1 : vector<2x256xf32>, i32 -> vector<2x256xf32>
    %8 = vector.broadcast %3 : vector<1x256xf32> to vector<2x256xf32>
    %9 = arith.mulf %7, %8 : vector<2x256xf32>
    %c240_i32 = arith.constant 240 : i32
    %10 = tpu.dynamic_rotate %1 by %c240_i32 dim 1 : vector<2x256xf32>, i32 -> vector<2x256xf32>
    %11 = vector.broadcast %4 : vector<1x256xf32> to vector<2x256xf32>
    %12 = arith.mulf %10, %11 : vector<2x256xf32>
    %cst = arith.constant 2.000000e+00 : f32
    %13 = vector.broadcast %cst : f32 to vector<2x256xf32>
    %14 = arith.mulf %13, %1 : vector<2x256xf32>
    %15 = arith.addf %9, %14 : vector<2x256xf32>
    %16 = arith.addf %15, %12 : vector<2x256xf32>
    %17 = arith.subf %9, %12 : vector<2x256xf32>
    %c1_i32 = arith.constant 1 : i32
    %18 = tpu.dynamic_rotate %16 by %c1_i32 dim 1 : vector<2x256xf32>, i32 -> vector<2x256xf32>
    %19 = vector.broadcast %5 : vector<1x256xf32> to vector<2x256xf32>
    %20 = arith.mulf %18, %19 : vector<2x256xf32>
    %c255_i32 = arith.constant 255 : i32
    %21 = tpu.dynamic_rotate %16 by %c255_i32 dim 1 : vector<2x256xf32>, i32 -> vector<2x256xf32>
    %22 = vector.broadcast %6 : vector<1x256xf32> to vector<2x256xf32>
    %23 = arith.mulf %21, %22 : vector<2x256xf32>
    %c1_i32_4 = arith.constant 1 : i32
    %24 = tpu.dynamic_rotate %17 by %c1_i32_4 dim 1 : vector<2x256xf32>, i32 -> vector<2x256xf32>
    %25 = vector.broadcast %5 : vector<1x256xf32> to vector<2x256xf32>
    %26 = arith.mulf %24, %25 : vector<2x256xf32>
    %c255_i32_5 = arith.constant 255 : i32
    %27 = tpu.dynamic_rotate %17 by %c255_i32_5 dim 1 : vector<2x256xf32>, i32 -> vector<2x256xf32>
    %28 = vector.broadcast %6 : vector<1x256xf32> to vector<2x256xf32>
    %29 = arith.mulf %27, %28 : vector<2x256xf32>
    %30 = arith.subf %20, %23 : vector<2x256xf32>
    %cst_6 = arith.constant 2.000000e+00 : f32
    %31 = vector.broadcast %cst_6 : f32 to vector<2x256xf32>
    %32 = arith.mulf %31, %17 : vector<2x256xf32>
    %33 = arith.addf %26, %32 : vector<2x256xf32>
    %34 = arith.addf %33, %29 : vector<2x256xf32>
    %35 = arith.mulf %30, %30 : vector<2x256xf32>
    %36 = arith.mulf %34, %34 : vector<2x256xf32>
    %37 = arith.addf %35, %36 : vector<2x256xf32>
    %38 = math.sqrt %37 : vector<2x256xf32>
    %cst_7 = arith.constant 2.000000e+00 : f32
    %39 = vector.broadcast %cst_7 : f32 to vector<2x256xf32>
    %40 = arith.mulf %39, %38 : vector<2x256xf32>
    %c0_8 = arith.constant 0 : index
    %c0_9 = arith.constant 0 : index
    %c0_10 = arith.constant 0 : index
    %41 = vector.load %arg3[%c0_8, %c0_9, %c0_10] : memref<1x2x256xf32, #tpu.memory_space<vmem>>, vector<1x2x256xf32>
    %42 = vector.shape_cast %41 : vector<1x2x256xf32> to vector<2x256xf32>
    %43 = vector.shape_cast %40 : vector<2x256xf32> to vector<1x2x256xf32>
    tpu.vector_store %arg3[%c0_8, %c0_9, %c0_10], %43 {strides = array<i32>} : memref<1x2x256xf32, #tpu.memory_space<vmem>>, vector<1x2x256xf32>,
    return
  }
  func.func @transform_0(%arg0: i32) -> (i32, i32, i32) {
    %c0_i32 = arith.constant 0 : i32
    %c0_i32_0 = arith.constant 0 : i32
    %c0_i32_1 = arith.constant 0 : i32
    return %arg0, %c0_i32, %c0_i32_0 : i32, i32, i32
  }
  func.func @transform_1(%arg0: i32) -> (i32, i32) {
    %c0_i32 = arith.constant 0 : i32
    %c0_i32_0 = arith.constant 0 : i32
    %c0_i32_1 = arith.constant 0 : i32
    return %c0_i32, %c0_i32_0 : i32, i32
  }
  func.func @transform_2(%arg0: i32) -> (i32, i32, i32) {
    %c0_i32 = arith.constant 0 : i32
    %c0_i32_0 = arith.constant 0 : i32
    %c0_i32_1 = arith.constant 0 : i32
    return %arg0, %c0_i32, %c0_i32_0 : i32, i32, i32
  }
}

</mosaic_0001>

<llo_original>
// kernel: tpu_custom_call.1
$region0: #{tpu_custom_call.1}
  #allocation0 [shape = 'u32[]', space=smem, size = 0x4, offset = 0x4, fixed_abs, tag = 'smem constant byte address 0x4 - core index']
  #allocation1 [shape = 'u32[144,128]{1,0:T(1,128)}', space=vmem, size = 0x12000, scoped, tag = 'internal scratch']
  %s0 = inlined_call_operand.hbm [shape: f32[1,2,256], index: 0, kind: input, shape index: {}]
  %s1 = inlined_call_operand.hbm [shape: f32[4,256], index: 1, kind: input, shape index: {}]
  %s2 = inlined_call_operand.hbm [shape: f32[1,2,256], index: 2, kind: output, shape index: {}]
  %s3 = sld [smem:[#allocation0]]
  $region26: #{tpu_custom_call.1} parent=0
    _
  %s5 = ssub.s32 1, %s3
  %s6 = scalar_select 0, %s5, %s3
  $region1: #{tpu_custom_call.1} parent=0
    #allocation2 [shape = 'u8[2048]{0}', space=vmem, size = 0x800, scoped, tag = 'input window, operand 0, single buffered']
    #allocation3 [shape = 's32[1]{0}', space=sflag, size = 0x4, scoped, tag = 'scoped memory for tpu_custom_call.1']
    #allocation4 [shape = 's32[1]{0}', space=sflag, size = 0x4, scoped, tag = 'scoped memory for tpu_custom_call.1']
    #allocation5 [shape = 'u8[4096]{0}', space=vmem, size = 0x1000, scoped, tag = 'input window, operand 1, single buffered']
    #allocation6 [shape = 's32[1]{0}', space=sflag, size = 0x4, scoped, tag = 'scoped memory for tpu_custom_call.1']
    #allocation7 [shape = 'u8[2048]{0}', space=vmem, size = 0x800, scoped, tag = 'output window, operand 0, single buffered']
    %7 = vsyncpa [#allocation3], 0
    %8 = vsyncpa [#allocation6], 0
    %9 = vsyncpa [#allocation4], 0
    // Predicated region
    $region2: #{tpu_custom_call.1} parent=1 // pred_check
      _
    $region3: #{tpu_custom_call.1} parent=1 // pred_check_branch
      %11 = sbr.rel (0) target = $region5
    $region4: #{tpu_custom_call.1} parent=1 // pred_region
      %s13 = ssub.s32 64, 64
      %14 = vsyncadd [#allocation3], %s13
      %s16 = sshll.u32 [#allocation2], 4
      %s17 = int_to_ptr.vmem [resolvable:$true] %s16
      %19 = dma.hbm_to_vmem [thread:$0]  %s0, 64, %s17, [#allocation3]
    $region5: #{tpu_custom_call.1} parent=1 // pred_fallthru
      _
    // Predicated region
    $region6: #{tpu_custom_call.1} parent=1 // pred_check
      _
    $region7: #{tpu_custom_call.1} parent=1 // pred_check_branch
      %21 = sbr.rel (0) target = $region9
    $region8: #{tpu_custom_call.1} parent=1 // pred_region
      %s23 = ssub.s32 128, 128
      %24 = vsyncadd [#allocation6], %s23
      %s26 = sshll.u32 [#allocation5], 4
      %s27 = int_to_ptr.vmem [resolvable:$true] %s26
      %29 = dma.hbm_to_vmem [thread:$0]  %s1, 128, %s27, [#allocation6]
    $region9: #{tpu_custom_call.1} parent=1 // pred_fallthru
      _
    // Predicated region
    $region10: #{tpu_custom_call.1} parent=1 // pred_check
      _
    $region11: #{tpu_custom_call.1} parent=1 // pred_check_branch
      %31 = sbr.rel (0) target = $region13
    $region12: #{tpu_custom_call.1} parent=1 // pred_region
      %32 = dma.done [#allocation3], 64
    $region13: #{tpu_custom_call.1} parent=1 // pred_fallthru
      _
    // Predicated region
    $region14: #{tpu_custom_call.1} parent=1 // pred_check
      _
    $region15: #{tpu_custom_call.1} parent=1 // pred_check_branch
      %34 = sbr.rel (0) target = $region17
    $region16: #{tpu_custom_call.1} parent=1 // pred_region
      %35 = dma.done [#allocation6], 128
    $region17: #{tpu_custom_call.1} parent=1 // pred_fallthru
      _
    %v36 = vld [vmem:[#allocation2] sm:$0xf]
    %v37 = vld [vmem:[#allocation5] sm:$0xff]
    %v40 = vunpack.c.l.s4 1983009808
    %v41 = vunpack.c.0.s8 %v40
    %v42 = vlaneseq
    %v43 = vshrl.u32 %v42, 7
    %v44 = vsub.s32 %v41, %v43
    %v45 = vrot.slane %v36, %v44
    %v46 = vcombine.high %v45, %v45
    %49 = vrot.lane.b32.xlu0 %v45, 16
    %v50 = vpop.permute.xlu0 %49
    %51 = vrot.lane.b32.xlu0 %v46, 16
    %v52 = vpop.permute.xlu0 %51
    %v53 = vlaneseq
    %v54 = vand.u32 %v53, 127
    %vm55 = vcmp.lt.s32.totalorder %v54, 16
    %v56 = vsel %vm55, %v50, %v52
    %v57 = vsel %vm55, %v52, %v50
    %v59 = vlaneseq
    %v60 = vshrl.u32 %v59, 7
    %v61 = vsub.s32 0, %v60
    %v62 = vrot.slane %v37, %v61
    %v63 = vlaneseq
    %v64 = vshrl.u32 %v63, 7
    %v65 = vsub.s32 4, %v64
    %v66 = vrot.slane %v37, %v65
    %v69 = vlaneseq
    %v70 = vshrl.u32 %v69, 7
    %v71 = vsub.s32 0, %v70
    %v72 = vrot.slane %v62, %v71
    %v73 = vlaneseq
    %v74 = vshrl.u32 %v73, 7
    %v75 = vsub.s32 0, %v74
    %v76 = vrot.slane %v66, %v75
    %v77 = vmul.f32 %v57, %v72
    %v78 = vmul.f32 %v56, %v76
    %79 = vrot.lane.b32.xlu0 %v45, 112
    %v80 = vpop.permute.xlu0 %79
    %81 = vrot.lane.b32.xlu0 %v46, 112
    %v82 = vpop.permute.xlu0 %81
    %vm83 = vcmp.lt.s32.totalorder %v54, 112
    %v84 = vsel %vm83, %v80, %v82
    %v85 = vsel %vm83, %v82, %v80
    %v86 = vlaneseq
    %v87 = vshrl.u32 %v86, 7
    %v88 = vsub.s32 1, %v87
    %v89 = vrot.slane %v37, %v88
    %v90 = vlaneseq
    %v91 = vshrl.u32 %v90, 7
    %v92 = vsub.s32 5, %v91
    %v93 = vrot.slane %v37, %v92
    %v96 = vlaneseq
    %v97 = vshrl.u32 %v96, 7
    %v98 = vsub.s32 1, %v97
    %v99 = vrot.slane %v89, %v98
    %v100 = vlaneseq
    %v101 = vshrl.u32 %v100, 7
    %v102 = vsub.s32 1, %v101
    %v103 = vrot.slane %v93, %v102
    %v104 = vmul.f32 %v84, %v99
    %v105 = vmul.f32 %v85, %v103
    %v106 = vmul.f32 %v36, 2.0
    %v109 = vunpack.c.l.s4 1983009808
    %v110 = vunpack.c.0.s8 %v109
    %v111 = vlaneseq
    %v112 = vshrl.u32 %v111, 7
    %v113 = vsub.s32 %v110, %v112
    %v114 = vrot.slane %v106, %v113
    %v115 = vcombine.high %v114, %v114
    %v118 = vadd.f32 %v77, %v114
    %v119 = vadd.f32 %v78, %v115
    %v120 = vadd.f32 %v118, %v104
    %v121 = vadd.f32 %v119, %v105
    %v122 = vsub.f32 %v77, %v104
    %v123 = vsub.f32 %v78, %v105
    %124 = vrot.lane.b32.xlu0 %v120, 1
    %v125 = vpop.permute.xlu0 %124
    %126 = vrot.lane.b32.xlu0 %v121, 1
    %v127 = vpop.permute.xlu0 %126
    %vm128 = vcmp.lt.s32.totalorder %v54, 1
    %v129 = vsel %vm128, %v125, %v127
    %v130 = vsel %vm128, %v127, %v125
    %v131 = vlaneseq
    %v132 = vshrl.u32 %v131, 7
    %v133 = vsub.s32 2, %v132
    %v134 = vrot.slane %v37, %v133
    %v135 = vlaneseq
    %v136 = vshrl.u32 %v135, 7
    %v137 = vsub.s32 6, %v136
    %v138 = vrot.slane %v37, %v137
    %v141 = vlaneseq
    %v142 = vshrl.u32 %v141, 7
    %v143 = vsub.s32 2, %v142
    %v144 = vrot.slane %v134, %v143
    %v145 = vlaneseq
    %v146 = vshrl.u32 %v145, 7
    %v147 = vsub.s32 2, %v146
    %v148 = vrot.slane %v138, %v147
    %v149 = vmul.f32 %v130, %v144
    %v150 = vmul.f32 %v129, %v148
    %151 = vrot.lane.b32.xlu0 %v120, 127
    %v152 = vpop.permute.xlu0 %151
    %153 = vrot.lane.b32.xlu0 %v121, 127
    %v154 = vpop.permute.xlu0 %153
    %vm155 = vcmp.lt.s32.totalorder %v54, 127
    %v156 = vsel %vm155, %v152, %v154
    %v157 = vsel %vm155, %v154, %v152
    %v158 = vlaneseq
    %v159 = vshrl.u32 %v158, 7
    %v160 = vsub.s32 3, %v159
    %v161 = vrot.slane %v37, %v160
    %v162 = vlaneseq
    %v163 = vshrl.u32 %v162, 7
    %v164 = vsub.s32 7, %v163
    %v165 = vrot.slane %v37, %v164
    %v168 = vlaneseq
    %v169 = vshrl.u32 %v168, 7
    %v170 = vsub.s32 3, %v169
    %v171 = vrot.slane %v161, %v170
    %v172 = vlaneseq
    %v173 = vshrl.u32 %v172, 7
    %v174 = vsub.s32 3, %v173
    %v175 = vrot.slane %v165, %v174
    %v176 = vmul.f32 %v156, %v171
    %v177 = vmul.f32 %v157, %v175
    %178 = vrot.lane.b32.xlu0 %v122, 1
    %v179 = vpop.permute.xlu0 %178
    %180 = vrot.lane.b32.xlu0 %v123, 1
    %v181 = vpop.permute.xlu0 %180
    %v182 = vsel %vm128, %v179, %v181
    %v183 = vsel %vm128, %v181, %v179
    %v184 = vmul.f32 %v183, %v144
    %v185 = vmul.f32 %v182, %v148
    %186 = vrot.lane.b32.xlu0 %v122, 127
    %v187 = vpop.permute.xlu0 %186
    %188 = vrot.lane.b32.xlu0 %v123, 127
    %v189 = vpop.permute.xlu0 %188
    %v190 = vsel %vm155, %v187, %v189
    %v191 = vsel %vm155, %v189, %v187
    %v192 = vmul.f32 %v190, %v171
    %v193 = vmul.f32 %v191, %v175
    %v194 = vsub.f32 %v149, %v176
    %v195 = vsub.f32 %v150, %v177
    %v196 = vmul.f32 %v122, 2.0
    %v197 = vmul.f32 %v123, 2.0
    %v198 = vadd.f32 %v184, %v196
    %v199 = vadd.f32 %v185, %v197
    %v200 = vadd.f32 %v198, %v192
    %v201 = vadd.f32 %v199, %v193
    %v202 = vmul.f32 %v194, %v194
    %v203 = vmul.f32 %v195, %v195
    %v204 = vmul.f32 %v200, %v200
    %v205 = vmul.f32 %v201, %v201
    %v206 = vadd.f32 %v202, %v204
    %v207 = vadd.f32 %v203, %v205
    %v208 = vrsqrt.pop %v206
    %v209 = vmul.f32 %v206, %v208
    %vm210 = vcmp.eq.f32.partialorder %v206, inf
    %v211 = vsel %vm210, %v206, %v209
    %vm212 = vcmp.eq.f32.partialorder %v206, 0.0
    %v213 = vand.u32 %v206, 2147483648
    %v214 = vsel %vm212, %v213, %v211
    %v215 = vrsqrt.pop %v207
    %v216 = vmul.f32 %v207, %v215
    %vm217 = vcmp.eq.f32.partialorder %v207, inf
    %v218 = vsel %vm217, %v207, %v216
    %vm219 = vcmp.eq.f32.partialorder %v207, 0.0
    %v220 = vand.u32 %v207, 2147483648
    %v221 = vsel %vm219, %v220, %v218
    %v222 = vmul.f32 %v214, 2.0
    %v223 = vmul.f32 %v221, 2.0
    %v226 = vcombine.low %v222, %v223
    %v228 = vunpack.c.l.s4 1983009808
    %v229 = vunpack.c.0.s8 %v228
    %v230 = vlaneseq
    %v231 = vshrl.u32 %v230, 7
    %v232 = vsub.s32 %v229, %v231
    %v233 = vrot.slane %v226, %v232
    %235 = vst [vmem:[#allocation7] sm:$0xf] %v233
    // Predicated region
    $region18: #{tpu_custom_call.1} parent=1 // pred_check
      _
    $region19: #{tpu_custom_call.1} parent=1 // pred_check_branch
      %237 = sbr.rel (0) target = $region21
    $region20: #{tpu_custom_call.1} parent=1 // pred_region
      %s239 = ssub.s32 64, 64
      %240 = vsyncadd [#allocation4], %s239
      %s242 = sshll.u32 [#allocation7], 4
      %s243 = int_to_ptr.vmem [resolvable:$true] %s242
      %245 = dma.vmem_to_hbm [thread:$0]  %s243, 64, %s2, [#allocation4]
    $region21: #{tpu_custom_call.1} parent=1 // pred_fallthru
      _
    // Predicated region
    $region22: #{tpu_custom_call.1} parent=1 // pred_check
      _
    $region23: #{tpu_custom_call.1} parent=1 // pred_check_branch
      %247 = sbr.rel (0) target = $region25
    $region24: #{tpu_custom_call.1} parent=1 // pred_region
      %248 = dma.done [#allocation4], 64
    $region25: #{tpu_custom_call.1} parent=1 // pred_fallthru
      _
    %249 = vsyncpa [#allocation3], 1
    %250 = vsyncpa [#allocation6], 1
    %251 = vsyncpa [#allocation4], 1

</llo_original>
